<compile_context>
chip_gen: v7x
topology: tpu7x:2x2x1
jax: 0.10.0
libtpu: 0.0.40
codegen_flags: <defaults>
</compile_context>

<pallas_src>
import jax
import jax.numpy as jnp
from jax.experimental import pallas as pl
from jax.experimental.pallas import tpu as pltpu


def _fused_permute_linear_stack_kernel(x1_ref, x2_ref, wt_ref, b_ref, out_ref):
    # x1_ref : (B, D, S)       full x1 in VMEM
    # x2_ref : (B, Din, S)     full x2 in VMEM
    # wt_ref : (Din, Dout)     pre-transposed linear weight (MXU-native layout)
    # b_ref  : (1, Dout)       linear bias
    # out_ref: (2, B, S, D)    out[0] = permute(x1), out[1] = linear(permute(x2))
    B, Din, S = x2_ref.shape
    Dout = wt_ref.shape[1]

    # v1 = x1.permute(0, 2, 1): one batched XLU transpose, one contiguous store.
    out_ref[0] = jnp.transpose(x1_ref[...], (0, 2, 1)).astype(out_ref.dtype)

    # v2 = permute(x2) @ W^T + b, as a single 2-D MXU matmul over all batches:
    #   (B, Din, S) -T-> (B, S, Din) -reshape-> (B*S, Din) @ (Din, Dout)
    # Reshape only merges/splits leading dims (S is a multiple of 8), so it is
    # layout-preserving; the transpose rides the XLU and overlaps the MXU.
    x2_t = jnp.transpose(x2_ref[...], (0, 2, 1)).reshape(B * S, Din)
    y = jnp.dot(x2_t, wt_ref[...], preferred_element_type=jnp.float32)  # (B*S, Dout)
    y = y + b_ref[...]                                                  # bias broadcast
    out_ref[1] = y.reshape(B, S, Dout).astype(out_ref.dtype)


def fused_permute_linear_stack(x1, x2, weight, bias):
    """x1: (B, D, S), x2: (B, Din, S), weight: (Dout, Din), bias: (Dout,).

    Returns jnp.stack([x1.permute(0,2,1), linear(x2.permute(0,2,1))]) with
    shape (2, B, S, D).  Requires D == Dout and x1's S == x2's S.
    """
    B, D, S = x1.shape
    B2, Din, S2 = x2.shape
    Dout, Din_w = weight.shape
    assert B == B2 and Din == Din_w and D == Dout and S == S2

    # One-time (1 KiB) transpose outside the kernel: RHS contraction axis is
    # already major so the MXU sees its native stationary-RHS layout.
    wt = weight.T                      # (Din, Dout)
    b2 = bias.reshape(1, Dout)

    itemsize = jnp.dtype(x1.dtype).itemsize
    bytes_accessed = itemsize * (x1.size + x2.size + wt.size + b2.size
                                 + 2 * B * S * Dout)

    return pl.pallas_call(
        _fused_permute_linear_stack_kernel,
        out_shape=jax.ShapeDtypeStruct((2, B, S, Dout), x1.dtype),
        # Single invocation (no grid): every operand is a whole-array VMEM
        # block — total footprint ~16 KiB, far under any VMEM limit.
        in_specs=[
            pl.BlockSpec(memory_space=pltpu.MemorySpace.VMEM),  # x1
            pl.BlockSpec(memory_space=pltpu.MemorySpace.VMEM),  # x2
            pl.BlockSpec(memory_space=pltpu.MemorySpace.VMEM),  # weight^T
            pl.BlockSpec(memory_space=pltpu.MemorySpace.VMEM),  # bias
        ],
        out_specs=pl.BlockSpec(memory_space=pltpu.MemorySpace.VMEM),
        # Dispatch/DMA-bound op: give XLA an honest (tiny) cost so it can
        # overlap the call instead of treating it as a big opaque kernel.
        cost_estimate=pl.CostEstimate(
            flops=2 * B * S * Din * Dout,
            transcendentals=0,
            bytes_accessed=int(bytes_accessed),
        ),
    )(x1, x2, wt, b2)


if __name__ == "__main__":
    key = jax.random.PRNGKey(0)
    k_x1, k_x2, k_w, k_b = jax.random.split(key, 4)

    # Shapes consistent with the forward pass: Linear(16, 16) fixes the
    # feature dims; torch.stack requires v1 and v2 to have matching shapes.
    B, S, D = 2, 32, 16
    x1 = jax.random.normal(k_x1, (B, D, S), dtype=jnp.float32)   # (2, 16, 32)
    x2 = jax.random.normal(k_x2, (B, D, S), dtype=jnp.float32)   # (2, 16, 32)

    # Deterministic nn.Linear(16, 16)-style init: U(-1/sqrt(in), 1/sqrt(in)).
    bound = 1.0 / (D ** 0.5)
    weight = jax.random.uniform(k_w, (D, D), jnp.float32, -bound, bound)
    bias = jax.random.uniform(k_b, (D,), jnp.float32, -bound, bound)

    out = jax.jit(fused_permute_linear_stack)(x1, x2, weight, bias)
    out = jax.block_until_ready(out)

    # Reference in plain JAX (mirrors the PyTorch forward exactly).
    v1_ref = jnp.transpose(x1, (0, 2, 1))
    v2_ref = jnp.transpose(x2, (0, 2, 1)) @ weight.T + bias
    ref = jnp.stack([v1_ref, v2_ref])
    assert out.shape == (2, B, S, D)
    assert jnp.allclose(out, ref, atol=1e-5, rtol=1e-5)

    print("KERNEL_OK")
</pallas_src>

<mosaic_0001>
module attributes {stable_mosaic.version = 11 : i64} {
  func.func @_fused_permute_linear_stack_kernel(%arg0: memref<2x16x32xf32, #tpu.memory_space<vmem>>, %arg1: memref<2x16x32xf32, #tpu.memory_space<vmem>>, %arg2: memref<16x16xf32, #tpu.memory_space<vmem>>, %arg3: memref<1x16xf32, #tpu.memory_space<vmem>>, %arg4: memref<2x2x32x16xf32, #tpu.memory_space<vmem>>) attributes {dimension_semantics = [], scalar_prefetch = 0 : i64, scratch_operands = 0 : i64, tpu.core_type = #tpu.core_type<tc>} {
    %c0 = arith.constant 0 : index
    %c0_0 = arith.constant 0 : index
    %c0_1 = arith.constant 0 : index
    %0 = vector.load %arg0[%c0, %c0_0, %c0_1] : memref<2x16x32xf32, #tpu.memory_space<vmem>>, vector<2x16x32xf32>
    %1 = tpu.transpose %0, [0, 2, 1] : vector<2x16x32xf32> -> vector<2x32x16xf32>
    %c0_2 = arith.constant 0 : index
    %c0_3 = arith.constant 0 : index
    %c0_4 = arith.constant 0 : index
    %c0_5 = arith.constant 0 : index
    %2 = vector.load %arg4[%c0_2, %c0_3, %c0_4, %c0_5] : memref<2x2x32x16xf32, #tpu.memory_space<vmem>>, vector<1x2x32x16xf32>
    %3 = vector.shape_cast %2 : vector<1x2x32x16xf32> to vector<2x32x16xf32>
    %4 = vector.shape_cast %1 : vector<2x32x16xf32> to vector<1x2x32x16xf32>
    tpu.vector_store %arg4[%c0_2, %c0_3, %c0_4, %c0_5], %4 {strides = array<i32>} : memref<2x2x32x16xf32, #tpu.memory_space<vmem>>, vector<1x2x32x16xf32>,
    %c0_6 = arith.constant 0 : index
    %c0_7 = arith.constant 0 : index
    %c0_8 = arith.constant 0 : index
    %5 = vector.load %arg1[%c0_6, %c0_7, %c0_8] : memref<2x16x32xf32, #tpu.memory_space<vmem>>, vector<2x16x32xf32>
    %6 = tpu.transpose %5, [0, 2, 1] : vector<2x16x32xf32> -> vector<2x32x16xf32>
    %7 = vector.shape_cast %6 : vector<2x32x16xf32> to vector<64x16xf32>
    %c0_9 = arith.constant 0 : index
    %c0_10 = arith.constant 0 : index
    %8 = vector.load %arg2[%c0_9, %c0_10] : memref<16x16xf32, #tpu.memory_space<vmem>>, vector<16x16xf32>
    %cst = arith.constant dense<0.000000e+00> : vector<64x16xf32>
    %9 = tpu.matmul %7, %8, %cst {dimension_numbers = #tpu.dot_dimension_numbers<[1], [0], [0], [1], [0, 0, 1, 1], [], []>} : vector<64x16xf32>, vector<16x16xf32>, vector<64x16xf32> -> vector<64x16xf32>
    %c0_11 = arith.constant 0 : index
    %c0_12 = arith.constant 0 : index
    %10 = vector.load %arg3[%c0_11, %c0_12] : memref<1x16xf32, #tpu.memory_space<vmem>>, vector<1x16xf32>
    %11 = vector.broadcast %10 : vector<1x16xf32> to vector<64x16xf32>
    %12 = arith.addf %9, %11 : vector<64x16xf32>
    %13 = vector.shape_cast %12 : vector<64x16xf32> to vector<2x32x16xf32>
    %c1 = arith.constant 1 : index
    %c0_13 = arith.constant 0 : index
    %c0_14 = arith.constant 0 : index
    %c0_15 = arith.constant 0 : index
    %14 = vector.load %arg4[%c1, %c0_13, %c0_14, %c0_15] : memref<2x2x32x16xf32, #tpu.memory_space<vmem>>, vector<1x2x32x16xf32>
    %15 = vector.shape_cast %14 : vector<1x2x32x16xf32> to vector<2x32x16xf32>
    %16 = vector.shape_cast %13 : vector<2x32x16xf32> to vector<1x2x32x16xf32>
    tpu.vector_store %arg4[%c1, %c0_13, %c0_14, %c0_15], %16 {strides = array<i32>} : memref<2x2x32x16xf32, #tpu.memory_space<vmem>>, vector<1x2x32x16xf32>,
    return
  }
}

</mosaic_0001>

<llo_original>
// kernel: fused_permute_linear_stack.1
$region0: #{fused_permute_linear_stack.1}
  #allocation0 [shape = 'u32[]', space=smem, size = 0x4, offset = 0x4, fixed_abs, tag = 'smem constant byte address 0x4 - core index']
  #allocation1 [shape = 'u32[144,128]{1,0:T(1,128)}', space=vmem, size = 0x12000, scoped, tag = 'internal scratch']
  %s0 = inlined_call_operand.vmem [shape: f32[2,16,32], index: 0, kind: input, shape index: {}]
  %s1 = inlined_call_operand.hbm [shape: f32[2,16,32], index: 1, kind: input, shape index: {}]
  %s2 = inlined_call_operand.vmem [shape: f32[16,16], index: 2, kind: input, shape index: {}]
  %s3 = inlined_call_operand.vmem [shape: f32[1,16], index: 3, kind: input, shape index: {}]
  %s4 = inlined_call_operand.vmem [shape: f32[2,2,32,16], index: 4, kind: output, shape index: {}]
  %s5 = sld [smem:[#allocation0]]
  $region30: #{fused_permute_linear_stack.1} parent=0
    _
  %s7 = ssub.s32 1, %s5
  %s8 = scalar_select 0, %s7, %s5
  $region1: #{fused_permute_linear_stack.1} parent=0
    #allocation2 [shape = 'u8[16384]{0}', space=vmem, size = 0x4000, scoped, tag = 'input window, operand 1, single buffered']
    #allocation3 [shape = 's32[1]{0}', space=sflag, size = 0x4, scoped, tag = 'scoped memory for fused_permute_linear_stack.1']
    %9 = vsyncpa [#allocation3], 0
    // Predicated region
    $region2: #{fused_permute_linear_stack.1} parent=1 // pred_check
      _
    $region3: #{fused_permute_linear_stack.1} parent=1 // pred_check_branch
      %11 = sbr.rel (0) target = $region5
    $region4: #{fused_permute_linear_stack.1} parent=1 // pred_region
      _
    $region5: #{fused_permute_linear_stack.1} parent=1 // pred_fallthru
      _
    // Predicated region
    $region6: #{fused_permute_linear_stack.1} parent=1 // pred_check
      _
    $region7: #{fused_permute_linear_stack.1} parent=1 // pred_check_branch
      %13 = sbr.rel (0) target = $region9
    $region8: #{fused_permute_linear_stack.1} parent=1 // pred_region
      %s15 = ssub.s32 512, 512
      %16 = vsyncadd [#allocation3], %s15
      %s17 = sshll.u32 [#allocation2], 4
      %s18 = int_to_ptr.vmem [resolvable:$true] %s17
      %23 = dma.hbm_to_vmem [thread:$0]  %s1, 512, %s18, [#allocation3], 128, 128, 8
    $region9: #{fused_permute_linear_stack.1} parent=1 // pred_fallthru
      _
    // Predicated region
    $region10: #{fused_permute_linear_stack.1} parent=1 // pred_check
      _
    $region11: #{fused_permute_linear_stack.1} parent=1 // pred_check_branch
      %25 = sbr.rel (0) target = $region13
    $region12: #{fused_permute_linear_stack.1} parent=1 // pred_region
      _
    $region13: #{fused_permute_linear_stack.1} parent=1 // pred_fallthru
      _
    // Predicated region
    $region14: #{fused_permute_linear_stack.1} parent=1 // pred_check
      _
    $region15: #{fused_permute_linear_stack.1} parent=1 // pred_check_branch
      %27 = sbr.rel (0) target = $region17
    $region16: #{fused_permute_linear_stack.1} parent=1 // pred_region
      _
    $region17: #{fused_permute_linear_stack.1} parent=1 // pred_fallthru
      _
    // Predicated region
    $region18: #{fused_permute_linear_stack.1} parent=1 // pred_check
      _
    $region19: #{fused_permute_linear_stack.1} parent=1 // pred_check_branch
      %29 = sbr.rel (0) target = $region21
    $region20: #{fused_permute_linear_stack.1} parent=1 // pred_region
      %30 = dma.done [#allocation3], 512
    $region21: #{fused_permute_linear_stack.1} parent=1 // pred_fallthru
      _
    %v31 = vld [vmem:[%s0] sm:$0xff]
    %v32 = vld [vmem:[%s0 + $0x8] sm:$0xff]
    %v33 = vld [vmem:[%s0 + $0x10] sm:$0xff]
    %v34 = vld [vmem:[%s0 + $0x18] sm:$0xff]
    %35 = vxpose.xlu0.b32.start [1/16] %v31, 128
    %36 = vxpose.xlu0.b32.cont [2/16] %v32, 128
    %37 = vxpose.xlu0.b32.cont [3/16] 0.0, 128
    %38 = vxpose.xlu0.b32.cont [4/16] 0.0, 128
    %39 = vxpose.xlu0.b32.cont [5/16] 0.0, 128
    %40 = vxpose.xlu0.b32.cont [6/16] 0.0, 128
    %41 = vxpose.xlu0.b32.cont [7/16] 0.0, 128
    %42 = vxpose.xlu0.b32.cont [8/16] 0.0, 128
    %43 = vxpose.xlu0.b32.cont [9/16] 0.0, 128
    %44 = vxpose.xlu0.b32.cont [10/16] 0.0, 128
    %45 = vxpose.xlu0.b32.cont [11/16] 0.0, 128
    %46 = vxpose.xlu0.b32.cont [12/16] 0.0, 128
    %47 = vxpose.xlu0.b32.cont [13/16] 0.0, 128
    %48 = vxpose.xlu0.b32.cont [14/16] 0.0, 128
    %49 = vxpose.xlu0.b32.cont [15/16] 0.0, 128
    %50 = vxpose.xlu0.b32.end [16/16] 0.0, 128
    %v51 = vpop.trf.xlu0
    %v52 = vpop.trf.xlu0
    %v53 = vpop.trf.xlu0
    %v54 = vpop.trf.xlu0
    %v55 = vpop.trf.xlu0
    %v56 = vpop.trf.xlu0
    %v57 = vpop.trf.xlu0
    %v58 = vpop.trf.xlu0
    %v59 = vpop.trf.xlu0
    %v60 = vpop.trf.xlu0
    %v61 = vpop.trf.xlu0
    %v62 = vpop.trf.xlu0
    %v63 = vpop.trf.xlu0
    %v64 = vpop.trf.xlu0
    %v65 = vpop.trf.xlu0
    %v66 = vpop.trf.xlu0
    %67 = vxpose.xlu0.b32.start [1/16] %v33, 128
    %68 = vxpose.xlu0.b32.cont [2/16] %v34, 128
    %69 = vxpose.xlu0.b32.cont [3/16] 0.0, 128
    %70 = vxpose.xlu0.b32.cont [4/16] 0.0, 128
    %71 = vxpose.xlu0.b32.cont [5/16] 0.0, 128
    %72 = vxpose.xlu0.b32.cont [6/16] 0.0, 128
    %73 = vxpose.xlu0.b32.cont [7/16] 0.0, 128
    %74 = vxpose.xlu0.b32.cont [8/16] 0.0, 128
    %75 = vxpose.xlu0.b32.cont [9/16] 0.0, 128
    %76 = vxpose.xlu0.b32.cont [10/16] 0.0, 128
    %77 = vxpose.xlu0.b32.cont [11/16] 0.0, 128
    %78 = vxpose.xlu0.b32.cont [12/16] 0.0, 128
    %79 = vxpose.xlu0.b32.cont [13/16] 0.0, 128
    %80 = vxpose.xlu0.b32.cont [14/16] 0.0, 128
    %81 = vxpose.xlu0.b32.cont [15/16] 0.0, 128
    %82 = vxpose.xlu0.b32.end [16/16] 0.0, 128
    %v83 = vpop.trf.xlu0
    %v84 = vpop.trf.xlu0
    %v85 = vpop.trf.xlu0
    %v86 = vpop.trf.xlu0
    %v87 = vpop.trf.xlu0
    %v88 = vpop.trf.xlu0
    %v89 = vpop.trf.xlu0
    %v90 = vpop.trf.xlu0
    %v91 = vpop.trf.xlu0
    %v92 = vpop.trf.xlu0
    %v93 = vpop.trf.xlu0
    %v94 = vpop.trf.xlu0
    %v95 = vpop.trf.xlu0
    %v96 = vpop.trf.xlu0
    %v97 = vpop.trf.xlu0
    %v98 = vpop.trf.xlu0
    %vm99 = vcmask 130048
    %100 = vst.msk [vmem:[%s4] sm:$0xff] %vm99, %v51
    %101 = vst.msk [vmem:[%s4 + $0x8] sm:$0xff] %vm99, %v52
    %102 = vst.msk [vmem:[%s4 + $0x10] sm:$0xff] %vm99, %v53
    %103 = vst.msk [vmem:[%s4 + $0x18] sm:$0xff] %vm99, %v54
    %104 = vst.msk [vmem:[%s4 + $0x20] sm:$0xff] %vm99, %v83
    %105 = vst.msk [vmem:[%s4 + $0x28] sm:$0xff] %vm99, %v84
    %106 = vst.msk [vmem:[%s4 + $0x30] sm:$0xff] %vm99, %v85
    %107 = vst.msk [vmem:[%s4 + $0x38] sm:$0xff] %vm99, %v86
    %v108 = vld [vmem:[#allocation2] sm:$0xff]
    %v109 = vld [vmem:[#allocation2 + $0x8] sm:$0xff]
    %v110 = vld [vmem:[#allocation2 + $0x10] sm:$0xff]
    %v111 = vld [vmem:[#allocation2 + $0x18] sm:$0xff]
    %112 = vxpose.xlu0.b32.start [1/16] %v108, 128
    %113 = vxpose.xlu0.b32.cont [2/16] %v109, 128
    %114 = vxpose.xlu0.b32.cont [3/16] 0.0, 128
    %115 = vxpose.xlu0.b32.cont [4/16] 0.0, 128
    %116 = vxpose.xlu0.b32.cont [5/16] 0.0, 128
    %117 = vxpose.xlu0.b32.cont [6/16] 0.0, 128
    %118 = vxpose.xlu0.b32.cont [7/16] 0.0, 128
    %119 = vxpose.xlu0.b32.cont [8/16] 0.0, 128
    %120 = vxpose.xlu0.b32.cont [9/16] 0.0, 128
    %121 = vxpose.xlu0.b32.cont [10/16] 0.0, 128
    %122 = vxpose.xlu0.b32.cont [11/16] 0.0, 128
    %123 = vxpose.xlu0.b32.cont [12/16] 0.0, 128
    %124 = vxpose.xlu0.b32.cont [13/16] 0.0, 128
    %125 = vxpose.xlu0.b32.cont [14/16] 0.0, 128
    %126 = vxpose.xlu0.b32.cont [15/16] 0.0, 128
    %127 = vxpose.xlu0.b32.end [16/16] 0.0, 128
    %v128 = vpop.trf.xlu0
    %v129 = vpop.trf.xlu0
    %v130 = vpop.trf.xlu0
    %v131 = vpop.trf.xlu0
    %v132 = vpop.trf.xlu0
    %v133 = vpop.trf.xlu0
    %v134 = vpop.trf.xlu0
    %v135 = vpop.trf.xlu0
    %v136 = vpop.trf.xlu0
    %v137 = vpop.trf.xlu0
    %v138 = vpop.trf.xlu0
    %v139 = vpop.trf.xlu0
    %v140 = vpop.trf.xlu0
    %v141 = vpop.trf.xlu0
    %v142 = vpop.trf.xlu0
    %v143 = vpop.trf.xlu0
    %144 = vxpose.xlu0.b32.start [1/16] %v110, 128
    %145 = vxpose.xlu0.b32.cont [2/16] %v111, 128
    %146 = vxpose.xlu0.b32.cont [3/16] 0.0, 128
    %147 = vxpose.xlu0.b32.cont [4/16] 0.0, 128
    %148 = vxpose.xlu0.b32.cont [5/16] 0.0, 128
    %149 = vxpose.xlu0.b32.cont [6/16] 0.0, 128
    %150 = vxpose.xlu0.b32.cont [7/16] 0.0, 128
    %151 = vxpose.xlu0.b32.cont [8/16] 0.0, 128
    %152 = vxpose.xlu0.b32.cont [9/16] 0.0, 128
    %153 = vxpose.xlu0.b32.cont [10/16] 0.0, 128
    %154 = vxpose.xlu0.b32.cont [11/16] 0.0, 128
    %155 = vxpose.xlu0.b32.cont [12/16] 0.0, 128
    %156 = vxpose.xlu0.b32.cont [13/16] 0.0, 128
    %157 = vxpose.xlu0.b32.cont [14/16] 0.0, 128
    %158 = vxpose.xlu0.b32.cont [15/16] 0.0, 128
    %159 = vxpose.xlu0.b32.end [16/16] 0.0, 128
    %v160 = vpop.trf.xlu0
    %v161 = vpop.trf.xlu0
    %v162 = vpop.trf.xlu0
    %v163 = vpop.trf.xlu0
    %v164 = vpop.trf.xlu0
    %v165 = vpop.trf.xlu0
    %v166 = vpop.trf.xlu0
    %v167 = vpop.trf.xlu0
    %v168 = vpop.trf.xlu0
    %v169 = vpop.trf.xlu0
    %v170 = vpop.trf.xlu0
    %v171 = vpop.trf.xlu0
    %v172 = vpop.trf.xlu0
    %v173 = vpop.trf.xlu0
    %v174 = vpop.trf.xlu0
    %v175 = vpop.trf.xlu0
    %v176 = vld [vmem:[%s2] sm:$0xff]
    %v177 = vld [vmem:[%s2 + $0x8] sm:$0xff]
    %v178 = vld [vmem:[%s3] sm:$0x1]
    %v180 = vlaneseq
    %v181 = vshrl.u32 %v180, 7
    %v182 = vsub.s32 0, %v181
    %v183 = vrot.slane %v178, %v182
    %v186 = vsel %vm99, %v128, 0
    %v189 = vsel %vm99, %v129, 0
    %v192 = vsel %vm99, %v130, 0
    %v195 = vsel %vm99, %v131, 0
    %v198 = vsel %vm99, %v160, 0
    %v201 = vsel %vm99, %v161, 0
    %v204 = vsel %vm99, %v162, 0
    %v207 = vsel %vm99, %v163, 0
    %209 = vmatprep.subr.mxu0 0.0
    %210 = vmatpush1.msra.mxu0 %v176
    %211 = vmatprep.subr.mxu0 0.0
    %212 = vmatpush1.msra.mxu0 %v177
    %213 = vmatprep.subr.mxu0 0.0
    %214 = vmatpush1.msra.mxu0 0.0
    %215 = vmatprep.subr.mxu0 0.0
    %216 = vmatpush1.msra.mxu0 0.0
    %217 = vmatprep.subr.mxu0 0.0
    %218 = vmatpush1.msra.mxu0 0.0
    %219 = vmatprep.subr.mxu0 0.0
    %220 = vmatpush1.msra.mxu0 0.0
    %221 = vmatprep.subr.mxu0 0.0
    %222 = vmatpush1.msra.mxu0 0.0
    %223 = vmatprep.subr.mxu0 0.0
    %224 = vmatpush1.msra.mxu0 0.0
    %225 = vmatprep.subr.mxu0 0.0
    %226 = vmatpush1.msra.mxu0 0.0
    %227 = vmatprep.subr.mxu0 0.0
    %228 = vmatpush1.msra.mxu0 0.0
    %229 = vmatprep.subr.mxu0 0.0
    %230 = vmatpush1.msra.mxu0 0.0
    %231 = vmatprep.subr.mxu0 0.0
    %232 = vmatpush1.msra.mxu0 0.0
    %233 = vmatprep.subr.mxu0 0.0
    %234 = vmatpush1.msra.mxu0 0.0
    %235 = vmatprep.subr.mxu0 0.0
    %236 = vmatpush1.msra.mxu0 0.0
    %237 = vmatprep.subr.mxu0 0.0
    %238 = vmatpush1.msra.mxu0 0.0
    %239 = vmatprep.subr.mxu0 0.0
    %240 = vmatpush1.msra.mxu0 0.0
    %241 = vmatprep.subr.mxu0 0.0
    %242 = vmatpush1.msra.mxu0 0.0
    %243 = vmatprep.subr.mxu0 0.0
    %244 = vmatpush1.msra.mxu0 0.0
    %245 = vmatprep.subr.mxu0 0.0
    %246 = vmatpush1.msra.mxu0 0.0
    %247 = vmatprep.subr.mxu0 0.0
    %248 = vmatpush1.msra.mxu0 0.0
    %249 = vmatprep.subr.mxu0 0.0
    %250 = vmatpush1.msra.mxu0 0.0
    %251 = vmatprep.subr.mxu0 0.0
    %252 = vmatpush1.msra.mxu0 0.0
    %253 = vmatprep.subr.mxu0 0.0
    %254 = vmatpush1.msra.mxu0 0.0
    %255 = vmatprep.subr.mxu0 0.0
    %256 = vmatpush1.msra.mxu0 0.0
    %257 = vmatprep.subr.mxu0 0.0
    %258 = vmatpush1.msra.mxu0 0.0
    %259 = vmatprep.subr.mxu0 0.0
    %260 = vmatpush1.msra.mxu0 0.0
    %261 = vmatprep.subr.mxu0 0.0
    %262 = vmatpush1.msra.mxu0 0.0
    %263 = vmatprep.subr.mxu0 0.0
    %264 = vmatpush1.msra.mxu0 0.0
    %265 = vmatprep.subr.mxu0 0.0
    %266 = vmatpush1.msra.mxu0 0.0
    %267 = vmatprep.subr.mxu0 0.0
    %268 = vmatpush1.msra.mxu0 0.0
    %269 = vmatprep.subr.mxu0 0.0
    %270 = vmatpush1.msra.mxu0 0.0
    %271 = vmatprep.subr.mxu0 0.0
    %272 = vmatpush1.msra.mxu0 0.0
    %273 = vmatprep.mubr.f32.mxu0 0.0
    %274 = vmatmul.mubr.f32.gmra.mrb[0].mxu0 %v186
    %v275 = vpop.f32.mrb[0].mxu0
    %v276 = vadd.f32 %v183, %v275
    %v277 = vpop.f32.mrb[0].mxu0
    %278 = vmatprep.mubr.f32.mxu0 0.0
    %279 = vmatmul.mubr.f32.gmra.mrb[0].mxu0 %v189
    %v280 = vpop.f32.mrb[0].mxu0
    %v281 = vadd.f32 %v183, %v280
    %v282 = vpop.f32.mrb[0].mxu0
    %283 = vmatprep.mubr.f32.mxu0 0.0
    %284 = vmatmul.mubr.f32.gmra.mrb[0].mxu0 %v192
    %v285 = vpop.f32.mrb[0].mxu0
    %v286 = vadd.f32 %v183, %v285
    %v287 = vpop.f32.mrb[0].mxu0
    %288 = vmatprep.mubr.f32.mxu0 0.0
    %289 = vmatmul.mubr.f32.gmra.mrb[0].mxu0 %v195
    %v290 = vpop.f32.mrb[0].mxu0
    %v291 = vadd.f32 %v183, %v290
    %v292 = vpop.f32.mrb[0].mxu0
    %293 = vmatprep.mubr.f32.mxu0 0.0
    %294 = vmatmul.mubr.f32.gmra.mrb[0].mxu0 %v198
    %v295 = vpop.f32.mrb[0].mxu0
    %v296 = vadd.f32 %v183, %v295
    %v297 = vpop.f32.mrb[0].mxu0
    %298 = vmatprep.mubr.f32.mxu0 0.0
    %299 = vmatmul.mubr.f32.gmra.mrb[0].mxu0 %v201
    %v300 = vpop.f32.mrb[0].mxu0
    %v301 = vadd.f32 %v183, %v300
    %v302 = vpop.f32.mrb[0].mxu0
    %303 = vmatprep.mubr.f32.mxu0 0.0
    %304 = vmatmul.mubr.f32.gmra.mrb[0].mxu0 %v204
    %v305 = vpop.f32.mrb[0].mxu0
    %v306 = vadd.f32 %v183, %v305
    %v307 = vpop.f32.mrb[0].mxu0
    %308 = vmatprep.mubr.f32.mxu0 0.0
    %309 = vmatmul.mubr.f32.gmra.mrb[0].mxu0 %v207
    %v310 = vpop.f32.mrb[0].mxu0
    %v311 = vadd.f32 %v183, %v310
    %v312 = vpop.f32.mrb[0].mxu0
    %313 = vdwg.mxu0
    %s314 = scalar_lea.vmem %s4, 64
    %315 = vst.msk [vmem:[%s314] sm:$0xff] %vm99, %v276
    %316 = vst.msk [vmem:[%s314 + $0x8] sm:$0xff] %vm99, %v281
    %317 = vst.msk [vmem:[%s314 + $0x10] sm:$0xff] %vm99, %v286
    %318 = vst.msk [vmem:[%s314 + $0x18] sm:$0xff] %vm99, %v291
    %319 = vst.msk [vmem:[%s314 + $0x20] sm:$0xff] %vm99, %v296
    %320 = vst.msk [vmem:[%s314 + $0x28] sm:$0xff] %vm99, %v301
    %321 = vst.msk [vmem:[%s314 + $0x30] sm:$0xff] %vm99, %v306
    %322 = vst.msk [vmem:[%s314 + $0x38] sm:$0xff] %vm99, %v311
    // Predicated region
    $region22: #{fused_permute_linear_stack.1} parent=1 // pred_check
      _
    $region23: #{fused_permute_linear_stack.1} parent=1 // pred_check_branch
      %324 = sbr.rel (0) target = $region25
    $region24: #{fused_permute_linear_stack.1} parent=1 // pred_region
      _
    $region25: #{fused_permute_linear_stack.1} parent=1 // pred_fallthru
      _
    // Predicated region
    $region26: #{fused_permute_linear_stack.1} parent=1 // pred_check
      _
    $region27: #{fused_permute_linear_stack.1} parent=1 // pred_check_branch
      %326 = sbr.rel (0) target = $region29
    $region28: #{fused_permute_linear_stack.1} parent=1 // pred_region
      _
    $region29: #{fused_permute_linear_stack.1} parent=1 // pred_fallthru
      _
    %327 = vsyncpa [#allocation3], 1

</llo_original>
